<compile_context>
chip_gen: v7x
topology: tpu7x:2x2x1
jax: 0.10.0
libtpu: 0.0.40
codegen_flags: <defaults>
</compile_context>

<pallas_src>
import math

import jax
import jax.numpy as jnp
from jax.experimental import pallas as pl
from jax.experimental.pallas import tpu as pltpu


def _attention_kernel(bias_ref, emb_dest_ref, m_mat_ref, feat_ref, out_ref,
                      m_scr, l_scr, acc_scr):
    k = pl.program_id(1)

    @pl.when(k == 0)
    def _():
        m_scr[...] = jnp.full_like(m_scr, -jnp.inf)
        l_scr[...] = jnp.zeros_like(l_scr)
        acc_scr[...] = jnp.zeros_like(acc_scr)

    # Logits for this (dst tile, src chunk): one small-K MXU matmul against the
    # pre-fused M = (W @ W2) @ (emb_src @ W).T chunk.
    e = jnp.dot(emb_dest_ref[...], m_mat_ref[...],
                preferred_element_type=jnp.float32)
    e = jnp.where(e > 0, e, 0.2 * e)                            # LeakyReLU(0.2)
    e = jnp.where(bias_ref[...] > 0, e, jnp.float32(-9.0e15))   # adjacency mask

    # Online softmax over the source axis.
    m_prev = m_scr[...]
    m_new = jnp.maximum(m_prev, jnp.max(e, axis=-1, keepdims=True))
    alpha = jnp.exp(m_prev - m_new)
    p = jnp.exp(e - m_new)
    l_scr[...] = alpha * l_scr[...] + jnp.sum(p, axis=-1, keepdims=True)
    # attention @ feature_src: bf16 operands, f32 accumulation.
    acc_scr[...] = alpha * acc_scr[...] + jnp.dot(
        p.astype(jnp.bfloat16), feat_ref[...],
        preferred_element_type=jnp.float32)
    m_scr[...] = m_new

    # TODO(synk): F.dropout on the attention weights is skipped — the module is
    # evaluated with training=False where dropout is the identity.

    @pl.when(k == pl.num_programs(1) - 1)
    def _():
        hp = acc_scr[...] * pl.reciprocal(l_scr[...], approx=True)
        out_ref[...] = jnp.where(hp > 0, hp, jnp.exp(hp) - 1.0)  # ELU(alpha=1)


def _round_up(x, m):
    return (x + m - 1) // m * m


def attention_layer_forward(bias, emb_dest, emb_src, feature_src, W, W2,
                            *, tile_d=256, tile_s=512):
    n_dst, in_dim = emb_dest.shape
    n_src, feat_dim = feature_src.shape

    # ---- Fused logits matrix, computed once with plain XLA (f32) ----
    # e = (emb_dest @ W @ W2) @ (emb_src @ W).T  ==  emb_dest @ M
    h1 = jnp.dot(emb_src, W, preferred_element_type=jnp.float32)       # (N_src, hidden)
    m_mat = jnp.dot(jnp.dot(W, W2, preferred_element_type=jnp.float32),
                    h1.T, preferred_element_type=jnp.float32)           # (in_dim, N_src)

    feat_b = feature_src.astype(jnp.bfloat16)   # bf16 MXU operand, f32 accumulation

    # ---- Destination-row tiling ----
    tile_d = min(tile_d, _round_up(n_dst, 8))
    n_dst_pad = _round_up(n_dst, tile_d)

    # ---- Source-axis tiling (online softmax); use full extent when small ----
    if n_src <= tile_s:
        tile_s = n_src                      # full dim -> no (8,128) constraint
    else:
        tile_s = _round_up(tile_s, 128)
    n_src_pad = _round_up(n_src, tile_s)

    # ---- Lane-dense feature dimension (avoid masked partial stores) ----
    feat_pad = _round_up(feat_dim, 128)

    pad_d, pad_s, pad_f = n_dst_pad - n_dst, n_src_pad - n_src, feat_pad - feat_dim
    if pad_d:
        emb_dest = jnp.pad(emb_dest, ((0, pad_d), (0, 0)))
    if pad_d or pad_s:
        bias = jnp.pad(bias, ((0, pad_d), (0, pad_s)))   # padded entries are masked
    if pad_s:
        m_mat = jnp.pad(m_mat, ((0, 0), (0, pad_s)))
    if pad_s or pad_f:
        feat_b = jnp.pad(feat_b, ((0, pad_s), (0, pad_f)))

    grid = (n_dst_pad // tile_d, n_src_pad // tile_s)

    # Explicit VMEM budget from the actual block footprint (double-buffered
    # streamed blocks + scratch), with headroom, capped so it fits v7x.
    est = 2 * (tile_d * tile_s * 4           # bias tile (f32)
               + tile_d * in_dim * 4         # emb_dest tile
               + in_dim * tile_s * 4         # fused-M chunk
               + tile_s * feat_pad * 2       # feature chunk (bf16)
               + tile_d * feat_pad * 4)      # output tile
    est += tile_d * (feat_pad + 2) * 4       # scratch: acc + running max + denom
    vmem_limit = min(48 << 20, max(32 << 20, 2 * est + (4 << 20)))

    out = pl.pallas_call(
        _attention_kernel,
        out_shape=jax.ShapeDtypeStruct((n_dst_pad, feat_pad), jnp.float32),
        grid_spec=pltpu.PrefetchScalarGridSpec(
            num_scalar_prefetch=0,
            grid=grid,
            in_specs=[
                pl.BlockSpec((tile_d, tile_s), lambda i, k: (i, k)),    # bias (f32)
                pl.BlockSpec((tile_d, in_dim), lambda i, k: (i, 0)),    # emb_dest tile
                pl.BlockSpec((in_dim, tile_s), lambda i, k: (0, k)),    # fused M chunk
                pl.BlockSpec((tile_s, feat_pad), lambda i, k: (k, 0)),  # feature chunk
            ],
            out_specs=pl.BlockSpec((tile_d, feat_pad), lambda i, k: (i, 0)),
            scratch_shapes=[
                pltpu.VMEM((tile_d, 1), jnp.float32),         # running max
                pltpu.VMEM((tile_d, 1), jnp.float32),         # running denominator
                pltpu.VMEM((tile_d, feat_pad), jnp.float32),  # output accumulator
            ],
        ),
        compiler_params=pltpu.CompilerParams(
            # NOTE: on v7x, pltpu.CORE_PARALLEL on the dst axis (or a core_map
            # with a leading size-2 core axis) is needed to truly shard across
            # the 2 TensorCores; "parallel" is kept here for portability.
            dimension_semantics=("parallel", "arbitrary"),
            vmem_limit_bytes=vmem_limit,
        ),
    )(bias, emb_dest, m_mat, feat_b)

    return out[:n_dst, :feat_dim]


def xavier_normal(key, shape, gain):
    fan_in, fan_out = shape
    std = gain * math.sqrt(2.0 / (fan_in + fan_out))
    return std * jax.random.normal(key, shape, dtype=jnp.float32)


def reference_forward(bias, emb_dest, emb_src, feature_src, W, W2):
    h1 = emb_src @ W
    h2 = emb_dest @ W
    e = (h2 @ W2) @ h1.T
    e = jnp.where(e > 0, e, 0.2 * e)
    att = jnp.where(bias > 0, e, -9.0e15)
    att = jax.nn.softmax(att, axis=1)
    hp = att @ feature_src
    return jax.nn.elu(hp)


if __name__ == "__main__":
    # small shapes consistent with the module
    n_dst, n_src = 16, 24
    in_dim, hidden, feat_dim = 8, 32, 64

    key = jax.random.PRNGKey(0)
    k_bias, k_dst, k_src, k_feat, k_w, k_w2 = jax.random.split(key, 6)

    # deterministic parameter init (xavier_normal, gain=sqrt(2))
    W = xavier_normal(k_w, (in_dim, hidden), math.sqrt(2.0))
    W2 = xavier_normal(k_w2, (hidden, hidden), math.sqrt(2.0))

    # deterministic inputs
    bias = (jax.random.uniform(k_bias, (n_dst, n_src)) > 0.5).astype(jnp.float32)
    emb_dest = jax.random.normal(k_dst, (n_dst, in_dim), dtype=jnp.float32)
    emb_src = jax.random.normal(k_src, (n_src, in_dim), dtype=jnp.float32)
    feature_src = jax.random.normal(k_feat, (n_src, feat_dim), dtype=jnp.float32)

    out = attention_layer_forward(bias, emb_dest, emb_src, feature_src, W, W2)
    out = jax.block_until_ready(out)

    ref = reference_forward(bias, emb_dest, emb_src, feature_src, W, W2)
    assert out.shape == (n_dst, feat_dim)
    # bf16 attention@feature matmul + approx reciprocal -> slightly relaxed tol
    err = float(jnp.max(jnp.abs(out - ref)))
    assert jnp.allclose(out, ref, atol=2e-2, rtol=2e-2), err

    print("KERNEL_OK")
</pallas_src>

<mosaic_0001>
module attributes {stable_mosaic.version = 11 : i64} {
  func.func @_attention_kernel(%arg0: i32, %arg1: i32, %arg2: memref<16x24xf32, #tpu.memory_space<vmem>>, %arg3: memref<16x8xf32, #tpu.memory_space<vmem>>, %arg4: memref<8x24xf32, #tpu.memory_space<vmem>>, %arg5: memref<24x128xbf16, #tpu.memory_space<vmem>>, %arg6: memref<16x128xf32, #tpu.memory_space<vmem>>, %arg7: memref<16x1xf32, #tpu.memory_space<vmem>>, %arg8: memref<16x1xf32, #tpu.memory_space<vmem>>, %arg9: memref<16x128xf32, #tpu.memory_space<vmem>>) attributes {dimension_semantics = [#tpu.dimension_semantics<parallel>, #tpu.dimension_semantics<arbitrary>], iteration_bounds = array<i64: 1, 1>, scalar_prefetch = 0 : i64, scratch_operands = 3 : i64, tpu.core_type = #tpu.core_type<tc>, window_params = [{transform_indices = @transform_0, window_bounds = array<i64: 16, 24>}, {transform_indices = @transform_1, window_bounds = array<i64: 16, 8>}, {transform_indices = @transform_2, window_bounds = array<i64: 8, 24>}, {transform_indices = @transform_3, window_bounds = array<i64: 24, 128>}, {transform_indices = @transform_4, window_bounds = array<i64: 16, 128>}]} {
    %c0_i32 = arith.constant 0 : i32
    %0 = arith.cmpi eq, %arg1, %c0_i32 : i32
    %1 = arith.extui %0 : i1 to i32
    %c0_i32_0 = arith.constant 0 : i32
    %2 = arith.cmpi ne, %1, %c0_i32_0 : i32
    scf.if %2 {
      %cst_29 = arith.constant 0xFF800000 : f32
      %43 = vector.broadcast %cst_29 : f32 to vector<16x1xf32>
      %c0_30 = arith.constant 0 : index
      %c0_31 = arith.constant 0 : index
      %44 = vector.load %arg7[%c0_30, %c0_31] : memref<16x1xf32, #tpu.memory_space<vmem>>, vector<16x1xf32>
      tpu.vector_store %arg7[%c0_30, %c0_31], %43 {strides = array<i32>} : memref<16x1xf32, #tpu.memory_space<vmem>>, vector<16x1xf32>,
      %cst_32 = arith.constant 0.000000e+00 : f32
      %45 = vector.broadcast %cst_32 : f32 to vector<16x1xf32>
      %c0_33 = arith.constant 0 : index
      %c0_34 = arith.constant 0 : index
      %46 = vector.load %arg8[%c0_33, %c0_34] : memref<16x1xf32, #tpu.memory_space<vmem>>, vector<16x1xf32>
      tpu.vector_store %arg8[%c0_33, %c0_34], %45 {strides = array<i32>} : memref<16x1xf32, #tpu.memory_space<vmem>>, vector<16x1xf32>,
      %cst_35 = arith.constant 0.000000e+00 : f32
      %47 = vector.broadcast %cst_35 : f32 to vector<16x128xf32>
      %c0_36 = arith.constant 0 : index
      %c0_37 = arith.constant 0 : index
      %48 = vector.load %arg9[%c0_36, %c0_37] : memref<16x128xf32, #tpu.memory_space<vmem>>, vector<16x128xf32>
      tpu.vector_store %arg9[%c0_36, %c0_37], %47 {strides = array<i32>} : memref<16x128xf32, #tpu.memory_space<vmem>>, vector<16x128xf32>,
    } else {
    }
    %c0 = arith.constant 0 : index
    %c0_1 = arith.constant 0 : index
    %3 = vector.load %arg3[%c0, %c0_1] : memref<16x8xf32, #tpu.memory_space<vmem>>, vector<16x8xf32>
    %c0_2 = arith.constant 0 : index
    %c0_3 = arith.constant 0 : index
    %4 = vector.load %arg4[%c0_2, %c0_3] : memref<8x24xf32, #tpu.memory_space<vmem>>, vector<8x24xf32>
    %cst = arith.constant dense<0.000000e+00> : vector<16x24xf32>
    %5 = tpu.matmul %3, %4, %cst {dimension_numbers = #tpu.dot_dimension_numbers<[1], [0], [0], [1], [0, 0, 1, 1], [], []>} : vector<16x8xf32>, vector<8x24xf32>, vector<16x24xf32> -> vector<16x24xf32>
    %cst_4 = arith.constant 0.000000e+00 : f32
    %6 = vector.broadcast %cst_4 : f32 to vector<16x24xf32>
    %7 = arith.cmpf ogt, %5, %6 : vector<16x24xf32>
    %cst_5 = arith.constant 2.000000e-01 : f32
    %8 = vector.broadcast %cst_5 : f32 to vector<16x24xf32>
    %9 = arith.mulf %8, %5 : vector<16x24xf32>
    %10 = arith.select %7, %5, %9 : vector<16x24xi1>, vector<16x24xf32>
    %c0_6 = arith.constant 0 : index
    %c0_7 = arith.constant 0 : index
    %11 = vector.load %arg2[%c0_6, %c0_7] : memref<16x24xf32, #tpu.memory_space<vmem>>, vector<16x24xf32>
    %cst_8 = arith.constant 0.000000e+00 : f32
    %12 = vector.broadcast %cst_8 : f32 to vector<16x24xf32>
    %13 = arith.cmpf ogt, %11, %12 : vector<16x24xf32>
    %cst_9 = arith.constant -9.000000e+15 : f32
    %14 = vector.broadcast %cst_9 : f32 to vector<16x24xf32>
    %15 = arith.select %13, %10, %14 : vector<16x24xi1>, vector<16x24xf32>
    %c0_10 = arith.constant 0 : index
    %c0_11 = arith.constant 0 : index
    %16 = vector.load %arg7[%c0_10, %c0_11] : memref<16x1xf32, #tpu.memory_space<vmem>>, vector<16x1xf32>
    %cst_12 = arith.constant dense<0xFF800000> : vector<16xf32>
    %17 = vector.multi_reduction <maximumf>, %15, %cst_12 [1] : vector<16x24xf32> to vector<16xf32>
    %18 = vector.shape_cast %17 : vector<16xf32> to vector<16x1xf32>
    %19 = arith.maximumf %16, %18 : vector<16x1xf32>
    %20 = arith.subf %16, %19 : vector<16x1xf32>
    %21 = math.exp %20 : vector<16x1xf32>
    %22 = vector.broadcast %19 : vector<16x1xf32> to vector<16x24xf32>
    %23 = arith.subf %15, %22 : vector<16x24xf32>
    %24 = math.exp %23 : vector<16x24xf32>
    %c0_13 = arith.constant 0 : index
    %c0_14 = arith.constant 0 : index
    %25 = vector.load %arg8[%c0_13, %c0_14] : memref<16x1xf32, #tpu.memory_space<vmem>>, vector<16x1xf32>
    %26 = arith.mulf %21, %25 : vector<16x1xf32>
    %cst_15 = arith.constant dense<0.000000e+00> : vector<16xf32>
    %27 = vector.multi_reduction <add>, %24, %cst_15 [1] : vector<16x24xf32> to vector<16xf32>
    %28 = vector.shape_cast %27 : vector<16xf32> to vector<16x1xf32>
    %29 = arith.addf %26, %28 : vector<16x1xf32>
    %c0_16 = arith.constant 0 : index
    %c0_17 = arith.constant 0 : index
    %30 = vector.load %arg8[%c0_16, %c0_17] : memref<16x1xf32, #tpu.memory_space<vmem>>, vector<16x1xf32>
    tpu.vector_store %arg8[%c0_16, %c0_17], %29 {strides = array<i32>} : memref<16x1xf32, #tpu.memory_space<vmem>>, vector<16x1xf32>,
    %c0_18 = arith.constant 0 : index
    %c0_19 = arith.constant 0 : index
    %31 = vector.load %arg9[%c0_18, %c0_19] : memref<16x128xf32, #tpu.memory_space<vmem>>, vector<16x128xf32>
    %32 = vector.broadcast %21 : vector<16x1xf32> to vector<16x128xf32>
    %33 = arith.mulf %32, %31 : vector<16x128xf32>
    %34 = arith.truncf %24 : vector<16x24xf32> to vector<16x24xbf16>
    %c0_20 = arith.constant 0 : index
    %c0_21 = arith.constant 0 : index
    %35 = vector.load %arg5[%c0_20, %c0_21] : memref<24x128xbf16, #tpu.memory_space<vmem>>, vector<24x128xbf16>
    %cst_22 = arith.constant dense<0.000000e+00> : vector<16x128xf32>
    %36 = tpu.matmul %34, %35, %cst_22 {dimension_numbers = #tpu.dot_dimension_numbers<[1], [0], [0], [1], [0, 0, 1, 1], [], []>} : vector<16x24xbf16>, vector<24x128xbf16>, vector<16x128xf32> -> vector<16x128xf32>
    %37 = arith.addf %33, %36 : vector<16x128xf32>
    %c0_23 = arith.constant 0 : index
    %c0_24 = arith.constant 0 : index
    %38 = vector.load %arg9[%c0_23, %c0_24] : memref<16x128xf32, #tpu.memory_space<vmem>>, vector<16x128xf32>
    tpu.vector_store %arg9[%c0_23, %c0_24], %37 {strides = array<i32>} : memref<16x128xf32, #tpu.memory_space<vmem>>, vector<16x128xf32>,
    %c0_25 = arith.constant 0 : index
    %c0_26 = arith.constant 0 : index
    %39 = vector.load %arg7[%c0_25, %c0_26] : memref<16x1xf32, #tpu.memory_space<vmem>>, vector<16x1xf32>
    tpu.vector_store %arg7[%c0_25, %c0_26], %19 {strides = array<i32>} : memref<16x1xf32, #tpu.memory_space<vmem>>, vector<16x1xf32>,
    %c0_i32_27 = arith.constant 0 : i32
    %40 = arith.cmpi eq, %arg1, %c0_i32_27 : i32
    %41 = arith.extui %40 : i1 to i32
    %c0_i32_28 = arith.constant 0 : i32
    %42 = arith.cmpi ne, %41, %c0_i32_28 : i32
    scf.if %42 {
      %c0_29 = arith.constant 0 : index
      %c0_30 = arith.constant 0 : index
      %43 = vector.load %arg9[%c0_29, %c0_30] : memref<16x128xf32, #tpu.memory_space<vmem>>, vector<16x128xf32>
      %c0_31 = arith.constant 0 : index
      %c0_32 = arith.constant 0 : index
      %44 = vector.load %arg8[%c0_31, %c0_32] : memref<16x1xf32, #tpu.memory_space<vmem>>, vector<16x1xf32>
      %45 = tpu.reciprocal %44 {approx = true} : vector<16x1xf32> -> vector<16x1xf32>
      %46 = vector.broadcast %45 : vector<16x1xf32> to vector<16x128xf32>
      %47 = arith.mulf %43, %46 : vector<16x128xf32>
      %cst_33 = arith.constant 0.000000e+00 : f32
      %48 = vector.broadcast %cst_33 : f32 to vector<16x128xf32>
      %49 = arith.cmpf ogt, %47, %48 : vector<16x128xf32>
      %50 = math.exp %47 : vector<16x128xf32>
      %cst_34 = arith.constant 1.000000e+00 : f32
      %51 = vector.broadcast %cst_34 : f32 to vector<16x128xf32>
      %52 = arith.subf %50, %51 : vector<16x128xf32>
      %53 = arith.select %49, %47, %52 : vector<16x128xi1>, vector<16x128xf32>
      %c0_35 = arith.constant 0 : index
      %c0_36 = arith.constant 0 : index
      %54 = vector.load %arg6[%c0_35, %c0_36] : memref<16x128xf32, #tpu.memory_space<vmem>>, vector<16x128xf32>
      tpu.vector_store %arg6[%c0_35, %c0_36], %53 {strides = array<i32>} : memref<16x128xf32, #tpu.memory_space<vmem>>, vector<16x128xf32>,
    } else {
    }
    return
  }
  func.func @transform_0(%arg0: i32, %arg1: i32) -> (i32, i32) {
    %c0_i32 = arith.constant 0 : i32
    return %arg0, %arg1 : i32, i32
  }
  func.func @transform_1(%arg0: i32, %arg1: i32) -> (i32, i32) {
    %c0_i32 = arith.constant 0 : i32
    %c0_i32_0 = arith.constant 0 : i32
    return %arg0, %c0_i32 : i32, i32
  }
  func.func @transform_2(%arg0: i32, %arg1: i32) -> (i32, i32) {
    %c0_i32 = arith.constant 0 : i32
    %c0_i32_0 = arith.constant 0 : i32
    return %c0_i32, %arg1 : i32, i32
  }
  func.func @transform_3(%arg0: i32, %arg1: i32) -> (i32, i32) {
    %c0_i32 = arith.constant 0 : i32
    %c0_i32_0 = arith.constant 0 : i32
    return %arg1, %c0_i32 : i32, i32
  }
  func.func @transform_4(%arg0: i32, %arg1: i32) -> (i32, i32) {
    %c0_i32 = arith.constant 0 : i32
    %c0_i32_0 = arith.constant 0 : i32
    return %arg0, %c0_i32 : i32, i32
  }
}

</mosaic_0001>

<llo_original>
// kernel: tpu_custom_call.1
$region0: #{tpu_custom_call.1}
  #allocation0 [shape = 'u32[]', space=smem, size = 0x4, offset = 0x4, fixed_abs, tag = 'smem constant byte address 0x4 - core index']
  #allocation1 [shape = 'u32[144,128]{1,0:T(1,128)}', space=vmem, size = 0x12000, scoped, tag = 'internal scratch']
  #allocation2 [shape = 'f32[16,1]{1,0:T(8,128)}', space=vmem, size = 0x2000, scoped, tag = 'scratch operand']
  #allocation3 [shape = 'f32[16,1]{1,0:T(8,128)}', space=vmem, size = 0x2000, scoped, tag = 'scratch operand']
  #allocation4 [shape = 'f32[16,128]{1,0:T(8,128)}', space=vmem, size = 0x2000, scoped, tag = 'scratch operand']
  %s0 = inlined_call_operand.vmem [shape: f32[16,24], index: 0, kind: input, shape index: {}]
  %s1 = inlined_call_operand.vmem [shape: f32[16,8], index: 1, kind: input, shape index: {}]
  %s2 = inlined_call_operand.hbm [shape: f32[8,24], index: 2, kind: input, shape index: {}]
  %s3 = inlined_call_operand.vmem [shape: bf16[24,128], index: 3, kind: input, shape index: {}]
  %s4 = inlined_call_operand.hbm [shape: f32[16,128], index: 4, kind: output, shape index: {}]
  %s5 = sld [smem:[#allocation0]]
  $region38: #{tpu_custom_call.1} parent=0
    _
  %s7 = ssub.s32 1, %s5
  %s8 = scalar_select 0, %s7, %s5
  $region1: #{tpu_custom_call.1} parent=0
    #allocation5 [shape = 'u8[4096]{0}', space=vmem, size = 0x1000, scoped, tag = 'input window, operand 2, single buffered']
    #allocation6 [shape = 's32[1]{0}', space=sflag, size = 0x4, scoped, tag = 'scoped memory for tpu_custom_call.1']
    #allocation7 [shape = 's32[1]{0}', space=sflag, size = 0x4, scoped, tag = 'scoped memory for tpu_custom_call.1']
    #allocation8 [shape = 'u8[8192]{0}', space=vmem, size = 0x2000, scoped, tag = 'output window, operand 0, single buffered']
    %9 = vsyncpa [#allocation6], 0
    %10 = vsyncpa [#allocation7], 0
    // Predicated region
    $region2: #{tpu_custom_call.1} parent=1 // pred_check
      _
    $region3: #{tpu_custom_call.1} parent=1 // pred_check_branch
      %12 = sbr.rel (0) target = $region5
    $region4: #{tpu_custom_call.1} parent=1 // pred_region
      _
    $region5: #{tpu_custom_call.1} parent=1 // pred_fallthru
      _
    // Predicated region
    $region6: #{tpu_custom_call.1} parent=1 // pred_check
      _
    $region7: #{tpu_custom_call.1} parent=1 // pred_check_branch
      %14 = sbr.rel (0) target = $region9
    $region8: #{tpu_custom_call.1} parent=1 // pred_region
      _
    $region9: #{tpu_custom_call.1} parent=1 // pred_fallthru
      _
    // Predicated region
    $region10: #{tpu_custom_call.1} parent=1 // pred_check
      _
    $region11: #{tpu_custom_call.1} parent=1 // pred_check_branch
      %16 = sbr.rel (0) target = $region13
    $region12: #{tpu_custom_call.1} parent=1 // pred_region
      %s18 = ssub.s32 128, 128
      %19 = vsyncadd [#allocation6], %s18
      %s21 = sshll.u32 [#allocation5], 4
      %s22 = int_to_ptr.vmem [resolvable:$true] %s21
      %24 = dma.hbm_to_vmem [thread:$0]  %s2, 128, %s22, [#allocation6]
    $region13: #{tpu_custom_call.1} parent=1 // pred_fallthru
      _
    // Predicated region
    $region14: #{tpu_custom_call.1} parent=1 // pred_check
      _
    $region15: #{tpu_custom_call.1} parent=1 // pred_check_branch
      %26 = sbr.rel (0) target = $region17
    $region16: #{tpu_custom_call.1} parent=1 // pred_region
      _
    $region17: #{tpu_custom_call.1} parent=1 // pred_fallthru
      _
    // Predicated region
    $region18: #{tpu_custom_call.1} parent=1 // pred_check
      _
    $region19: #{tpu_custom_call.1} parent=1 // pred_check_branch
      %28 = sbr.rel (0) target = $region21
    $region20: #{tpu_custom_call.1} parent=1 // pred_region
      %29 = dma.done [#allocation6], 128
    $region21: #{tpu_custom_call.1} parent=1 // pred_fallthru
      _
    %p31 = scmp.eq.s32.totalorder 0, 0
    // Predicated region
    $region22: #{tpu_custom_call.1} parent=1 // pred_check
      %p32 = pneg %p31
    $region23: #{tpu_custom_call.1} parent=1 // pred_check_branch
      %34 = sbr.rel (%p32) target = $region25
    $region24: #{tpu_custom_call.1} parent=1 // pred_region
      %vm35 = vcmask 7168
      %36 = vst.msk [vmem:[#allocation2] sm:$0xff] %vm35, -inf
      %37 = vst.msk [vmem:[#allocation2 + $0x8] sm:$0xff] %vm35, -inf
      %38 = vst.msk [vmem:[#allocation3] sm:$0xff] %vm35, 0.0
      %39 = vst.msk [vmem:[#allocation3 + $0x8] sm:$0xff] %vm35, 0.0
      %40 = vst [vmem:[#allocation4] sm:$0xff] 0.0
      %41 = vst [vmem:[#allocation4 + $0x8] sm:$0xff] 0.0
    $region25: #{tpu_custom_call.1} parent=1 // pred_fallthru
      _
    %v42 = vld [vmem:[%s1] sm:$0xff]
    %v43 = vld [vmem:[%s1 + $0x8] sm:$0xff]
    %v44 = vld [vmem:[#allocation5] sm:$0xff]
    %vm45 = vcmask 64512
    %v47 = vsel %vm45, %v42, 0
    %v50 = vsel %vm45, %v43, 0
    %52 = vmatprep.subr.mxu0 0.0
    %53 = vmatpush1.msra.mxu0 %v44
    %54 = vmatprep.subr.mxu0 0.0
    %55 = vmatpush1.msra.mxu0 0.0
    %56 = vmatprep.subr.mxu0 0.0
    %57 = vmatpush1.msra.mxu0 0.0
    %58 = vmatprep.subr.mxu0 0.0
    %59 = vmatpush1.msra.mxu0 0.0
    %60 = vmatprep.subr.mxu0 0.0
    %61 = vmatpush1.msra.mxu0 0.0
    %62 = vmatprep.subr.mxu0 0.0
    %63 = vmatpush1.msra.mxu0 0.0
    %64 = vmatprep.subr.mxu0 0.0
    %65 = vmatpush1.msra.mxu0 0.0
    %66 = vmatprep.subr.mxu0 0.0
    %67 = vmatpush1.msra.mxu0 0.0
    %68 = vmatprep.subr.mxu0 0.0
    %69 = vmatpush1.msra.mxu0 0.0
    %70 = vmatprep.subr.mxu0 0.0
    %71 = vmatpush1.msra.mxu0 0.0
    %72 = vmatprep.subr.mxu0 0.0
    %73 = vmatpush1.msra.mxu0 0.0
    %74 = vmatprep.subr.mxu0 0.0
    %75 = vmatpush1.msra.mxu0 0.0
    %76 = vmatprep.subr.mxu0 0.0
    %77 = vmatpush1.msra.mxu0 0.0
    %78 = vmatprep.subr.mxu0 0.0
    %79 = vmatpush1.msra.mxu0 0.0
    %80 = vmatprep.subr.mxu0 0.0
    %81 = vmatpush1.msra.mxu0 0.0
    %82 = vmatprep.subr.mxu0 0.0
    %83 = vmatpush1.msra.mxu0 0.0
    %84 = vmatprep.subr.mxu0 0.0
    %85 = vmatpush1.msra.mxu0 0.0
    %86 = vmatprep.subr.mxu0 0.0
    %87 = vmatpush1.msra.mxu0 0.0
    %88 = vmatprep.subr.mxu0 0.0
    %89 = vmatpush1.msra.mxu0 0.0
    %90 = vmatprep.subr.mxu0 0.0
    %91 = vmatpush1.msra.mxu0 0.0
    %92 = vmatprep.subr.mxu0 0.0
    %93 = vmatpush1.msra.mxu0 0.0
    %94 = vmatprep.subr.mxu0 0.0
    %95 = vmatpush1.msra.mxu0 0.0
    %96 = vmatprep.subr.mxu0 0.0
    %97 = vmatpush1.msra.mxu0 0.0
    %98 = vmatprep.subr.mxu0 0.0
    %99 = vmatpush1.msra.mxu0 0.0
    %100 = vmatprep.subr.mxu0 0.0
    %101 = vmatpush1.msra.mxu0 0.0
    %102 = vmatprep.subr.mxu0 0.0
    %103 = vmatpush1.msra.mxu0 0.0
    %104 = vmatprep.subr.mxu0 0.0
    %105 = vmatpush1.msra.mxu0 0.0
    %106 = vmatprep.subr.mxu0 0.0
    %107 = vmatpush1.msra.mxu0 0.0
    %108 = vmatprep.subr.mxu0 0.0
    %109 = vmatpush1.msra.mxu0 0.0
    %110 = vmatprep.subr.mxu0 0.0
    %111 = vmatpush1.msra.mxu0 0.0
    %112 = vmatprep.subr.mxu0 0.0
    %113 = vmatpush1.msra.mxu0 0.0
    %114 = vmatprep.subr.mxu0 0.0
    %115 = vmatpush1.msra.mxu0 0.0
    %116 = vmatprep.mubr.f32.mxu0 0.0
    %117 = vmatmul.mubr.f32.gmra.mrb[0].mxu0 %v47
    %v118 = vpop.f32.mrb[0].mxu0
    %v119 = vadd.f32 0.0, %v118
    %v120 = vpop.f32.mrb[0].mxu0
    %121 = vmatprep.mubr.f32.mxu0 0.0
    %122 = vmatmul.mubr.f32.gmra.mrb[0].mxu0 %v50
    %v123 = vpop.f32.mrb[0].mxu0
    %v124 = vadd.f32 0.0, %v123
    %v125 = vpop.f32.mrb[0].mxu0
    %126 = vdwg.mxu0
    %vm127 = vcmp.gt.f32.partialorder %v119, 0.0
    %vm128 = vcmp.gt.f32.partialorder %v124, 0.0
    %v129 = vmul.f32 %v119, 0.2
    %v130 = vmul.f32 %v124, 0.2
    %v131 = vsel %vm127, %v119, %v129
    %v132 = vsel %vm128, %v124, %v130
    %v133 = vld [vmem:[%s0] sm:$0xff]
    %v134 = vld [vmem:[%s0 + $0x8] sm:$0xff]
    %vm135 = vcmp.gt.f32.partialorder %v133, 0.0
    %vm136 = vcmp.gt.f32.partialorder %v134, 0.0
    %v137 = vsel %vm135, %v131, -9e+15
    %v138 = vsel %vm136, %v132, -9e+15
    %v139 = vld [vmem:[#allocation2] sm:$0xff]
    %v140 = vld [vmem:[#allocation2 + $0x8] sm:$0xff]
    %vm141 = vcmask 195584
    %v142 = vsel %vm141, %v137, -inf
    %143 = vmax.xlane.f32.xlu0 %v142
    %v144 = vpop.xlane.xlu0 %143
    %v145 = vsel %vm141, %v138, -inf
    %146 = vmax.xlane.f32.xlu0 %v145
    %v147 = vpop.xlane.xlu0 %146
    %v148 = vmax.f32 %v139, %v144
    %v149 = vmax.f32 %v140, %v147
    %v150 = vsub.f32 %v139, %v148
    %v151 = vsub.f32 %v140, %v149
    %v152 = vmul.f32 %v150, 1.442695
    %v153 = vpow.pop %v152
    %v154 = vmul.f32 %v151, 1.442695
    %v155 = vpow.pop %v154
    %157 = vset.pattern.permute.xlu0 0
    %158 = vperm.xlu0 %157, %v148
    %v159 = vpop.permute.xlu0 %158
    %162 = vset.pattern.permute.xlu0 0
    %163 = vperm.xlu0 %162, %v149
    %v164 = vpop.permute.xlu0 %163
    %v166 = vsub.f32 %v137, %v159
    %v167 = vsub.f32 %v138, %v164
    %v168 = vmul.f32 %v166, 1.442695
    %v169 = vpow.pop %v168
    %v170 = vmul.f32 %v167, 1.442695
    %v171 = vpow.pop %v170
    %v172 = vld [vmem:[#allocation3] sm:$0xff]
    %v173 = vld [vmem:[#allocation3 + $0x8] sm:$0xff]
    %v174 = vmul.f32 %v153, %v172
    %v175 = vmul.f32 %v155, %v173
    %v176 = vsel %vm141, %v169, 0.0
    %177 = vadd.xlane.f32.xlu0 %v176
    %v178 = vpop.xlane.xlu0 %177
    %v179 = vsel %vm141, %v171, 0.0
    %180 = vadd.xlane.f32.xlu0 %v179
    %v181 = vpop.xlane.xlu0 %180
    %v182 = vadd.f32 %v174, %v178
    %v183 = vadd.f32 %v175, %v181
    %vm184 = vcmask 7168
    %185 = vst.msk [vmem:[#allocation3] sm:$0xff] %vm184, %v182
    %186 = vst.msk [vmem:[#allocation3 + $0x8] sm:$0xff] %vm184, %v183
    %v187 = vld [vmem:[#allocation4] sm:$0xff]
    %v188 = vld [vmem:[#allocation4 + $0x8] sm:$0xff]
    %190 = vset.pattern.permute.xlu0 0
    %191 = vperm.xlu0 %190, %v153
    %v192 = vpop.permute.xlu0 %191
    %195 = vset.pattern.permute.xlu0 0
    %196 = vperm.xlu0 %195, %v155
    %v197 = vpop.permute.xlu0 %196
    %v199 = vmul.f32 %v192, %v187
    %v200 = vmul.f32 %v197, %v188
    %v201 = vpack.c.bf16 %v171, %v169
    %v202 = vld [vmem:[%s3] sm:$0xf]
    %v203 = vld [vmem:[%s3 + $0x4] sm:$0xf]
    %v204 = vld [vmem:[%s3 + $0x8] sm:$0xf]
    %v208 = vunpack.c.l.b16 %v202
    %v209 = vunpack.c.l.b16 %v203
    %v210 = vunpack.c.l.b16 %v204
    %v211 = vpack.c.b16 %v209, %v208
    %v212 = vpack.c.b16 %v210, %v210
    %v215 = vsel %vm141, %v201, 0
    %vm217 = vcmask 1043456
    %v219 = vsel %vm217, %v212, 0
    %221 = vmatprep.subr.bf16.mxu0 0
    %222 = vmatpush1.bf16.msra.mxu0 %v211
    %223 = vmatprep.subr.bf16.mxu0 0
    %224 = vmatpush1.bf16.msra.mxu0 %v219
    %225 = vmatprep.subr.bf16.mxu0 0
    %226 = vmatpush1.bf16.msra.mxu0 0
    %227 = vmatprep.subr.bf16.mxu0 0
    %228 = vmatpush1.bf16.msra.mxu0 0
    %229 = vmatprep.subr.bf16.mxu0 0
    %230 = vmatpush1.bf16.msra.mxu0 0
    %231 = vmatprep.subr.bf16.mxu0 0
    %232 = vmatpush1.bf16.msra.mxu0 0
    %233 = vmatprep.subr.bf16.mxu0 0
    %234 = vmatpush1.bf16.msra.mxu0 0
    %235 = vmatprep.subr.bf16.mxu0 0
    %236 = vmatpush1.bf16.msra.mxu0 0
    %237 = vmatprep.subr.bf16.mxu0 0
    %238 = vmatpush1.bf16.msra.mxu0 0
    %239 = vmatprep.subr.bf16.mxu0 0
    %240 = vmatpush1.bf16.msra.mxu0 0
    %241 = vmatprep.subr.bf16.mxu0 0
    %242 = vmatpush1.bf16.msra.mxu0 0
    %243 = vmatprep.subr.bf16.mxu0 0
    %244 = vmatpush1.bf16.msra.mxu0 0
    %245 = vmatprep.subr.bf16.mxu0 0
    %246 = vmatpush1.bf16.msra.mxu0 0
    %247 = vmatprep.subr.bf16.mxu0 0
    %248 = vmatpush1.bf16.msra.mxu0 0
    %249 = vmatprep.subr.bf16.mxu0 0
    %250 = vmatpush1.bf16.msra.mxu0 0
    %251 = vmatprep.subr.bf16.mxu0 0
    %252 = vmatpush1.bf16.msra.mxu0 0
    %253 = vmatprep.mubr.bf16.mxu0 0
    %254 = vmatmul.mubr.bf16.gmra.mrb[0].mxu0 %v215
    %v255 = vpop.f32.mrb[0].mxu0
    %v256 = vadd.f32 0.0, %v255
    %v257 = vpop.f32.mrb[0].mxu0
    %v258 = vpop.f32.mrb[0].mxu0
    %v259 = vadd.f32 0.0, %v258
    %v260 = vpop.f32.mrb[0].mxu0
    %261 = vdwg.mxu0
    %v262 = vadd.f32 %v199, %v256
    %v263 = vadd.f32 %v200, %v259
    %264 = vst [vmem:[#allocation4] sm:$0xff] %v262
    %265 = vst [vmem:[#allocation4 + $0x8] sm:$0xff] %v263
    %266 = vst.msk [vmem:[#allocation2] sm:$0xff] %vm184, %v148
    %267 = vst.msk [vmem:[#allocation2 + $0x8] sm:$0xff] %vm184, %v149
    // Predicated region
    $region26: #{tpu_custom_call.1} parent=1 // pred_check
      %p268 = pneg %p31
    $region27: #{tpu_custom_call.1} parent=1 // pred_check_branch
      %270 = sbr.rel (%p268) target = $region29
    $region28: #{tpu_custom_call.1} parent=1 // pred_region
      %v271 = vld [vmem:[#allocation4] sm:$0xff]
      %v272 = vld [vmem:[#allocation4 + $0x8] sm:$0xff]
      %v273 = vld [vmem:[#allocation3] sm:$0xff]
      %v274 = vld [vmem:[#allocation3 + $0x8] sm:$0xff]
      %v275 = vrcp.pop %v273
      %v276 = vrcp.pop %v274
      %278 = vset.pattern.permute.xlu0 0
      %279 = vperm.xlu0 %278, %v275
      %v280 = vpop.permute.xlu0 %279
      %283 = vset.pattern.permute.xlu0 0
      %284 = vperm.xlu0 %283, %v276
      %v285 = vpop.permute.xlu0 %284
      %v287 = vmul.f32 %v271, %v280
      %v288 = vmul.f32 %v272, %v285
      %vm289 = vcmp.gt.f32.partialorder %v287, 0.0
      %vm290 = vcmp.gt.f32.partialorder %v288, 0.0
      %v291 = vmul.f32 %v287, 1.442695
      %v292 = vpow.pop %v291
      %v293 = vmul.f32 %v288, 1.442695
      %v294 = vpow.pop %v293
      %v295 = vsub.f32 %v292, 1.0
      %v296 = vsub.f32 %v294, 1.0
      %v297 = vsel %vm289, %v287, %v295
      %v298 = vsel %vm290, %v288, %v296
      %299 = vst [vmem:[#allocation8] sm:$0xff] %v297
      %300 = vst [vmem:[#allocation8 + $0x8] sm:$0xff] %v298
    $region29: #{tpu_custom_call.1} parent=1 // pred_fallthru
      _
    // Predicated region
    $region30: #{tpu_custom_call.1} parent=1 // pred_check
      _
    $region31: #{tpu_custom_call.1} parent=1 // pred_check_branch
      %302 = sbr.rel (0) target = $region33
    $region32: #{tpu_custom_call.1} parent=1 // pred_region
      %s304 = ssub.s32 256, 256
      %305 = vsyncadd [#allocation7], %s304
      %s306 = sshll.u32 [#allocation8], 4
      %s307 = int_to_ptr.vmem [resolvable:$true] %s306
      %312 = dma.vmem_to_hbm [thread:$0]  %s307, 256, %s4, [#allocation7], 128, 128, 8
    $region33: #{tpu_custom_call.1} parent=1 // pred_fallthru
      _
    // Predicated region
    $region34: #{tpu_custom_call.1} parent=1 // pred_check
      _
    $region35: #{tpu_custom_call.1} parent=1 // pred_check_branch
      %314 = sbr.rel (0) target = $region37
    $region36: #{tpu_custom_call.1} parent=1 // pred_region
      %315 = dma.done [#allocation7], 256
    $region37: #{tpu_custom_call.1} parent=1 // pred_fallthru
      _
    %316 = vsyncpa [#allocation6], 1
    %317 = vsyncpa [#allocation7], 1

</llo_original>
